<compile_context>
chip_gen: v5e
topology: v5e:2x2
jax: 0.10.0
libtpu: 0.0.40
codegen_flags: <defaults>
</compile_context>

<pallas_src>
import jax
import jax.numpy as jnp
from jax.experimental import pallas as pl
from jax.experimental.pallas import tpu as pltpu


_VMEM_TILE_BUDGET = 8 * 1024 * 1024     # target resident working set for the tiles (bytes)
_VMEM_LIMIT_BYTES = 32 * 1024 * 1024    # explicit scoped-VMEM limit, valid on v5e/v6e/v7x


def _batch_const_mul_kernel(x_ref, y_ref, o_ref):
    # x_ref: (TM, 1)   y_ref: (TM, D)   o_ref: (TM, D)
    x = x_ref[...].astype(o_ref.dtype)
    y = y_ref[...].astype(o_ref.dtype)
    o_ref[...] = x * y          # (TM,1) * (TM,D): lane-splat broadcast on the VPU


def _choose_tm(rows, d, x_bytes, y_bytes, o_bytes):
    # VMEM bytes per fused row (x + y + out tiles, x2 for double buffering).
    per_row = 2 * (x_bytes + (y_bytes + o_bytes) * d)
    tm = max(8, _VMEM_TILE_BUDGET // max(per_row, 1))
    if tm >= rows:
        return rows                       # single full-extent block is always legal
    return max(8, (tm // 8) * 8)          # keep the sublane dim a multiple of 8


def batch_const_mul(x: jax.Array, y: jax.Array, *, tm=None) -> jax.Array:
    assert x.ndim == 2 and y.ndim == 3
    assert x.shape[0] == y.shape[0] and x.shape[1] == y.shape[1]
    B, C = x.shape
    D = y.shape[2]
    rows = B * C

    out_dtype = jnp.result_type(x.dtype, y.dtype)   # match torch type promotion

    x2 = x.reshape(rows, 1)
    y2 = y.reshape(rows, D)

    if tm is None:
        tm = _choose_tm(rows, D,
                        x2.dtype.itemsize, y2.dtype.itemsize,
                        jnp.dtype(out_dtype).itemsize)
    tm = min(int(tm), rows)

    grid = (pl.cdiv(rows, tm),)

    out2 = pl.pallas_call(
        _batch_const_mul_kernel,
        out_shape=jax.ShapeDtypeStruct((rows, D), out_dtype),
        grid=grid,
        in_specs=[
            pl.BlockSpec((tm, 1), lambda i: (i, 0)),   # per-row scalar (broadcast source)
            pl.BlockSpec((tm, D), lambda i: (i, 0)),
        ],
        out_specs=pl.BlockSpec((tm, D), lambda i: (i, 0)),
        compiler_params=pltpu.CompilerParams(
            dimension_semantics=("parallel",),
            vmem_limit_bytes=_VMEM_LIMIT_BYTES,
        ),
    )(x2, y2)

    return out2.reshape(B, C, D)


if __name__ == "__main__":
    key = jax.random.PRNGKey(0)
    k1, k2, k3, k4 = jax.random.split(key, 4)

    # Small shapes consistent with the module's per-variate feature maps.
    B, C, D = 2, 8, 128
    x = jax.random.normal(k1, (B, C), dtype=jnp.float32)
    y = jax.random.normal(k2, (B, C, D), dtype=jnp.float32)
    out = jax.block_until_ready(batch_const_mul(x, y))
    ref = x[..., None] * y
    assert out.shape == (B, C, D) and out.dtype == ref.dtype
    assert jnp.allclose(out, ref, atol=1e-6, rtol=1e-6)

    # Larger fused-row problem exercising the multi-block grid path (4 tiles of 512 rows).
    B2, C2, D2 = 16, 128, 256
    x2 = jax.random.normal(k3, (B2, C2), dtype=jnp.float32)
    y2 = jax.random.normal(k4, (B2, C2, D2), dtype=jnp.float32)
    out2 = jax.block_until_ready(batch_const_mul(x2, y2, tm=512))
    ref2 = x2[..., None] * y2
    assert jnp.allclose(out2, ref2, atol=1e-6, rtol=1e-6)

    # Mixed-dtype check: output dtype follows jnp.result_type (PyTorch-style promotion).
    y_bf16 = y.astype(jnp.bfloat16)
    out3 = jax.block_until_ready(batch_const_mul(x, y_bf16))
    ref3 = x[..., None] * y_bf16
    assert out3.dtype == ref3.dtype == jnp.float32
    assert jnp.allclose(out3, ref3, atol=1e-6, rtol=1e-6)

    # TODO(synk): FeatureExtractor's submodules (ConvConstr, NonOverlapConvConstr,
    # IndependConvConstr, LinProjConstr, EmbeddingConstr) are not defined in the provided
    # spec; only the batch_const_mul broadcast-multiply helper is kernelized here.

    print("KERNEL_OK")
</pallas_src>

<mosaic_0001>
module attributes {stable_mosaic.version = 11 : i64} {
  func.func @_batch_const_mul_kernel(%arg0: i32, %arg1: memref<16x1xf32, #tpu.memory_space<vmem>>, %arg2: memref<16x128xf32, #tpu.memory_space<vmem>>, %arg3: memref<16x128xf32, #tpu.memory_space<vmem>>) attributes {dimension_semantics = [#tpu.dimension_semantics<parallel>], iteration_bounds = array<i64: 1>, scalar_prefetch = 0 : i64, scratch_operands = 0 : i64, tpu.core_type = #tpu.core_type<tc>, window_params = [{transform_indices = @transform_0, window_bounds = array<i64: 16, 1>}, {transform_indices = @transform_1, window_bounds = array<i64: 16, 128>}, {transform_indices = @transform_2, window_bounds = array<i64: 16, 128>}]} {
    %c0 = arith.constant 0 : index
    %c0_0 = arith.constant 0 : index
    %0 = vector.load %arg1[%c0, %c0_0] : memref<16x1xf32, #tpu.memory_space<vmem>>, vector<16x1xf32>
    %c0_1 = arith.constant 0 : index
    %c0_2 = arith.constant 0 : index
    %1 = vector.load %arg2[%c0_1, %c0_2] : memref<16x128xf32, #tpu.memory_space<vmem>>, vector<16x128xf32>
    %2 = vector.broadcast %0 : vector<16x1xf32> to vector<16x128xf32>
    %3 = arith.mulf %2, %1 : vector<16x128xf32>
    %c0_3 = arith.constant 0 : index
    %c0_4 = arith.constant 0 : index
    %4 = vector.load %arg3[%c0_3, %c0_4] : memref<16x128xf32, #tpu.memory_space<vmem>>, vector<16x128xf32>
    tpu.vector_store %arg3[%c0_3, %c0_4], %3 {strides = array<i32>} : memref<16x128xf32, #tpu.memory_space<vmem>>, vector<16x128xf32>,
    return
  }
  func.func @transform_0(%arg0: i32) -> (i32, i32) {
    %c0_i32 = arith.constant 0 : i32
    %c0_i32_0 = arith.constant 0 : i32
    return %arg0, %c0_i32 : i32, i32
  }
  func.func @transform_1(%arg0: i32) -> (i32, i32) {
    %c0_i32 = arith.constant 0 : i32
    %c0_i32_0 = arith.constant 0 : i32
    return %arg0, %c0_i32 : i32, i32
  }
  func.func @transform_2(%arg0: i32) -> (i32, i32) {
    %c0_i32 = arith.constant 0 : i32
    %c0_i32_0 = arith.constant 0 : i32
    return %arg0, %c0_i32 : i32, i32
  }
}

</mosaic_0001>

<llo_original>
// kernel: tpu_custom_call.1
$region0: #{tpu_custom_call.1}
  #allocation0 [shape = 'u32[]', space=smem, size = 0x4, offset = 0x4, fixed_abs, tag = 'smem constant byte address 0x4 - core index']
  #allocation1 [shape = 'u32[72,128]{1,0:T(1,128)}', space=vmem, size = 0x9000, scoped, tag = 'internal scratch']
  %s0 = inlined_call_operand.vmem [shape: f32[16,1], index: 0, kind: input, shape index: {}]
  %s1 = inlined_call_operand.vmem [shape: f32[16,128], index: 1, kind: input, shape index: {}]
  %s2 = inlined_call_operand.hbm [shape: f32[16,128], index: 2, kind: output, shape index: {}]
  %s3 = sld [smem:[#allocation0]]
  $region18: #{tpu_custom_call.1} parent=0
    _
  %s5 = ssub.s32 1, %s3
  %s6 = scalar_select 0, %s5, %s3
  $region1: #{tpu_custom_call.1} parent=0
    #allocation2 [shape = 'u8[8192]{0}', space=vmem, size = 0x2000, scoped, tag = 'output window, operand 0, single buffered']
    #allocation3 [shape = 's32[1]{0}', space=sflag, size = 0x4, scoped, tag = 'scoped memory for tpu_custom_call.1']
    %7 = vsyncpa [#allocation3], 0
    // Predicated region
    $region2: #{tpu_custom_call.1} parent=1 // pred_check
      _
    $region3: #{tpu_custom_call.1} parent=1 // pred_check_branch
      %9 = sbr.rel (0) target = $region5
    $region4: #{tpu_custom_call.1} parent=1 // pred_region
      _
    $region5: #{tpu_custom_call.1} parent=1 // pred_fallthru
      _
    // Predicated region
    $region6: #{tpu_custom_call.1} parent=1 // pred_check
      _
    $region7: #{tpu_custom_call.1} parent=1 // pred_check_branch
      %11 = sbr.rel (0) target = $region9
    $region8: #{tpu_custom_call.1} parent=1 // pred_region
      _
    $region9: #{tpu_custom_call.1} parent=1 // pred_fallthru
      _
    %v12 = vld [vmem:[%s0] sm:$0xff]
    %v13 = vld [vmem:[%s0 + $0x8] sm:$0xff]
    %v14 = vld [vmem:[%s1] sm:$0xff]
    %v15 = vld [vmem:[%s1 + $0x8] sm:$0xff]
    %17 = vset.pattern.permute.xlu0 0
    %18 = vperm.xlu0 %17, %v12
    %v19 = vpop.permute.xlu0 %18
    %22 = vset.pattern.permute.xlu0 0
    %23 = vperm.xlu0 %22, %v13
    %v24 = vpop.permute.xlu0 %23
    %v26 = vmul.f32 %v19, %v14
    %v27 = vmul.f32 %v24, %v15
    %28 = vst [vmem:[#allocation2] sm:$0xff] %v26
    %29 = vst [vmem:[#allocation2 + $0x8] sm:$0xff] %v27
    // Predicated region
    $region10: #{tpu_custom_call.1} parent=1 // pred_check
      _
    $region11: #{tpu_custom_call.1} parent=1 // pred_check_branch
      %31 = sbr.rel (0) target = $region13
    $region12: #{tpu_custom_call.1} parent=1 // pred_region
      %33 = vsyncadd [#allocation3], 0
      %s34 = sshll.u32 [#allocation2], 4
      %s35 = int_to_ptr.vmem [resolvable:$true] %s34
      %s36 = sshll.u32 %s2, 4
      %s37 = int_to_ptr.hbm [resolvable:$true] %s36
      %42 = dma.vmem_to_hbm [thread:$0]  %s35, 256, %s37, [#allocation3], 128, 128, 8
    $region13: #{tpu_custom_call.1} parent=1 // pred_fallthru
      _
    // Predicated region
    $region14: #{tpu_custom_call.1} parent=1 // pred_check
      _
    $region15: #{tpu_custom_call.1} parent=1 // pred_check_branch
      %44 = sbr.rel (0) target = $region17
    $region16: #{tpu_custom_call.1} parent=1 // pred_region
      %46 = dma.done [#allocation3], 256
    $region17: #{tpu_custom_call.1} parent=1 // pred_fallthru
      _
    %47 = vsyncpa [#allocation3], 1

</llo_original>
